<compile_context>
chip_gen: v7x
topology: tpu7x:2x2x1
jax: 0.10.0
libtpu: 0.0.40
codegen_flags: <defaults>
</compile_context>

<pallas_src>
import functools

import jax
import jax.numpy as jnp
from jax.experimental import pallas as pl
from jax.experimental.pallas import tpu as pltpu


def _round_up(x, m):
    return (x + m - 1) // m * m


# ----------------------------------------------------------------------------
# Lane-fused path: x viewed as (bs, CN*T), block = (bs, tc*T), lane-dense.
# ----------------------------------------------------------------------------
def _bn1d_fused_kernel(x_ref, g_ref, b_ref, elt_ref, etl_ref, o_ref, *, eps,
                       inv_n):
    # x_ref: (bs, L) block with L = tc*T; local channel j owns lanes
    # [j*T, (j+1)*T).  elt: (L, tc) 0/1 lanes->channels; etl: (tc, L) inverse.
    x = x_ref[...].astype(jnp.float32)
    elt = elt_ref[...]
    etl = etl_ref[...]

    # Per-lane sums over the batch (cheap cross-sublane reduce), then
    # per-channel segment sums via a tiny MXU matmul.
    cs1 = jnp.sum(x, axis=0, keepdims=True)            # (1, L)
    cs2 = jnp.sum(x * x, axis=0, keepdims=True)        # (1, L)
    dn = (((1,), (0,)), ((), ()))
    s1 = jax.lax.dot_general(cs1, elt, dn,
                             preferred_element_type=jnp.float32)  # (1, tc)
    s2 = jax.lax.dot_general(cs2, elt, dn,
                             preferred_element_type=jnp.float32)  # (1, tc)

    mean = s1 * inv_n
    var = jnp.maximum(s2 * inv_n - mean * mean, 0.0)    # biased variance
    inv = jax.lax.rsqrt(var + eps)                      # (1, tc), EUP

    # Broadcast per-channel stats back to lanes (channels -> lanes).
    mean_l = jax.lax.dot_general(mean, etl, dn,
                                 preferred_element_type=jnp.float32)  # (1, L)
    inv_l = jax.lax.dot_general(inv, etl, dn,
                                preferred_element_type=jnp.float32)   # (1, L)

    g = g_ref[...]                                      # (1, L), pre-broadcast
    b = b_ref[...]
    scale = g * inv_l
    shift = b - mean_l * scale
    o_ref[...] = (x * scale + shift).astype(o_ref.dtype)


def _pick_fused_tc(bs, cn, t, itemsize, *, block_budget=4 << 20,
                   e_budget=2 << 20):
    """Largest channel tile tc such that cn % tc == 0, the lane block L=tc*T
    is a multiple of 128 (or tc == cn), and block / segment-matrix budgets
    hold.  Prefers a grid of >= 2 steps (pipelining / megacore)."""
    def valid(tc):
        if cn % tc:
            return False
        if (tc * t) % 128 != 0 and tc != cn:
            return False
        if tc * tc * t * 4 > e_budget:
            return False
        if bs * tc * t * itemsize > block_budget:
            return False
        return True

    for need_multi in (True, False):
        for tc in range(cn, 0, -1):
            if need_multi and cn // tc < 2:
                continue
            if valid(tc):
                return tc
    return None


def _bn1d_fused(x_bct, gamma, beta, tc, *, eps):
    bs, cn, t = x_bct.shape
    itemsize = jnp.dtype(x_bct.dtype).itemsize
    l = tc * t
    num_blocks = cn // tc
    inv_n = 1.0 / float(bs * t)

    x2 = x_bct.reshape(bs, cn * t)                      # free reshape
    g_l = jnp.repeat(gamma.astype(jnp.float32), t).reshape(1, cn * t)
    b_l = jnp.repeat(beta.astype(jnp.float32), t).reshape(1, cn * t)

    ch = jnp.arange(tc, dtype=jnp.int32)
    seg = jnp.arange(l, dtype=jnp.int32) // t
    e_lt = (seg[:, None] == ch[None, :]).astype(jnp.float32)   # (L, tc)
    e_tl = (ch[:, None] == seg[None, :]).astype(jnp.float32)   # (tc, L)

    kernel = functools.partial(_bn1d_fused_kernel, eps=float(eps), inv_n=inv_n)

    block_bytes = bs * l * itemsize
    needed = (4 * block_bytes            # double-buffered in + out blocks
              + 4 * (2 * l * 4)          # gamma/beta lane blocks
              + 2 * tc * l * 4           # resident segment matrices
              + (4 << 20))
    vmem_limit = int(min(max(needed, 32 << 20), 64 << 20))

    n_elems = bs * cn * t
    cost = pl.CostEstimate(
        flops=8 * n_elems,
        transcendentals=cn,
        bytes_accessed=2 * n_elems * itemsize + 2 * cn * t * 4,
    )

    y2 = pl.pallas_call(
        kernel,
        out_shape=jax.ShapeDtypeStruct((bs, cn * t), x_bct.dtype),
        grid_spec=pltpu.PrefetchScalarGridSpec(
            num_scalar_prefetch=0,
            grid=(num_blocks,),
            in_specs=[
                pl.BlockSpec((bs, l), lambda i: (0, i)),       # x block
                pl.BlockSpec((1, l), lambda i: (0, i)),        # gamma (lanes)
                pl.BlockSpec((1, l), lambda i: (0, i)),        # beta  (lanes)
                pl.BlockSpec((l, tc), lambda i: (0, 0)),       # lanes->chan
                pl.BlockSpec((tc, l), lambda i: (0, 0)),       # chan->lanes
            ],
            out_specs=pl.BlockSpec((bs, l), lambda i: (0, i)),
        ),
        compiler_params=pltpu.CompilerParams(
            dimension_semantics=("parallel",),
            vmem_limit_bytes=vmem_limit,
        ),
        cost_estimate=cost,
    )(x2, g_l, b_l, e_lt, e_tl)
    return y2.reshape(bs, cn, t)


# ----------------------------------------------------------------------------
# Fallback 3D path: block = (bs, tc, T).  Used when T is already lane-dense
# (T % 128 == 0) or when no lane-fused tiling exists.
# ----------------------------------------------------------------------------
def _bn1d_3d_kernel(x_ref, g_ref, b_ref, o_ref, *, eps, inv_n):
    x = x_ref[...].astype(jnp.float32)                  # (bs, tc, T)
    s1 = jnp.sum(x, axis=0)                             # (tc, T)
    s2 = jnp.sum(x * x, axis=0)
    mean = jnp.sum(s1, axis=1, keepdims=True) * inv_n   # (tc, 1)
    ex2 = jnp.sum(s2, axis=1, keepdims=True) * inv_n
    var = jnp.maximum(ex2 - mean * mean, 0.0)
    inv = jax.lax.rsqrt(var + eps)
    g = g_ref[...]                                      # (tc, 1), f32
    b = b_ref[...]
    scale = g * inv
    shift = b - mean * scale
    o_ref[...] = (x * scale[None] + shift[None]).astype(o_ref.dtype)


def _pick_3d_tc(cn, row_bytes, *, max_block_bytes=4 << 20, max_tc=512):
    cap = max(1, min(max_tc, max_block_bytes // max(row_bytes, 1)))
    cap = min(cap, cn)

    def ok(tc, need_multi):
        if cn % tc:
            return False
        if need_multi and cn // tc < 2:
            return False
        return tc % 8 == 0 or tc == cn

    for need_multi in (True, False):
        for tc in range(cap, 0, -1):
            if ok(tc, need_multi):
                return tc
    return cn


def _bn1d_3d(x_bct, gamma, beta, *, eps):
    bs, cn, t = x_bct.shape
    itemsize = jnp.dtype(x_bct.dtype).itemsize
    t_pad = _round_up(t, 128)                           # VMEM lane padding
    tc = _pick_3d_tc(cn, bs * t_pad * itemsize)
    num_blocks = cn // tc
    inv_n = 1.0 / float(bs * t)

    g2 = gamma.reshape(cn, 1).astype(jnp.float32)
    b2 = beta.reshape(cn, 1).astype(jnp.float32)

    kernel = functools.partial(_bn1d_3d_kernel, eps=float(eps), inv_n=inv_n)

    block_bytes = bs * tc * t_pad * itemsize
    needed = 4 * block_bytes + 8 * cn * 4 + (4 << 20)
    vmem_limit = int(min(max(needed, 32 << 20), 64 << 20))

    n_elems = bs * cn * t
    cost = pl.CostEstimate(
        flops=6 * n_elems,
        transcendentals=cn,
        bytes_accessed=2 * n_elems * itemsize + 2 * cn * 4,
    )

    return pl.pallas_call(
        kernel,
        out_shape=jax.ShapeDtypeStruct((bs, cn, t), x_bct.dtype),
        grid_spec=pltpu.PrefetchScalarGridSpec(
            num_scalar_prefetch=0,
            grid=(num_blocks,),
            in_specs=[
                pl.BlockSpec((bs, tc, t), lambda i: (0, i, 0)),
                pl.BlockSpec((tc, 1), lambda i: (i, 0)),        # gamma slice
                pl.BlockSpec((tc, 1), lambda i: (i, 0)),        # beta slice
            ],
            out_specs=pl.BlockSpec((bs, tc, t), lambda i: (0, i, 0)),
        ),
        compiler_params=pltpu.CompilerParams(
            dimension_semantics=("parallel",),
            vmem_limit_bytes=vmem_limit,
        ),
        cost_estimate=cost,
    )(x_bct, g2, b2)


# ----------------------------------------------------------------------------
# Public entry points
# ----------------------------------------------------------------------------
def _bn1d_pallas(x_bct, gamma, beta, *, eps=1e-5):
    """x_bct: (bs, CN, T); gamma/beta: (CN,). Training-mode BatchNorm1d."""
    bs, cn, t = x_bct.shape
    itemsize = jnp.dtype(x_bct.dtype).itemsize
    if t % 128 != 0:
        tc = _pick_fused_tc(bs, cn, t, itemsize)
        if tc is not None:
            return _bn1d_fused(x_bct, gamma, beta, tc, eps=eps)
    return _bn1d_3d(x_bct, gamma, beta, eps=eps)


def norm_data_forward(x, gamma, beta, *, eps=1e-5):
    """Pallas equivalent of norm_data.forward.

    x: (bs, C, num_point, step), gamma/beta: (C*num_point,)
    Returns (bs, C, num_point, step).
    """
    bs, c, v, t = x.shape
    cn = c * v
    # Free reshapes only (no HBM transpose): (bs,C,V,T) <-> (bs,CN,T).
    x_bct = x.reshape(bs, cn, t)
    y_bct = _bn1d_pallas(x_bct, gamma, beta, eps=eps)
    return y_bct.reshape(bs, c, v, t)
    # TODO(synk): running_mean/running_var buffer updates (training side
    # effect of nn.BatchNorm1d) are not produced; they do not affect the
    # forward output.


def norm_data_reference(x, gamma, beta, *, eps=1e-5):
    """Pure-JAX reference (training-mode BatchNorm1d over (N, C, L))."""
    bs, c, v, t = x.shape
    cn = c * v
    xr = x.reshape(bs, cn, t).astype(jnp.float32)
    mean = jnp.mean(xr, axis=(0, 2), keepdims=True)
    var = jnp.mean((xr - mean) ** 2, axis=(0, 2), keepdims=True)
    y = (xr - mean) / jnp.sqrt(var + eps)
    y = y * gamma.reshape(1, cn, 1) + beta.reshape(1, cn, 1)
    return y.reshape(bs, c, v, t).astype(x.dtype)


if __name__ == "__main__":
    # Small shapes consistent with SGN usage: (bs, C, num_point, step)
    bs, c, v, t = 2, 4, 16, 16
    cn = c * v  # BatchNorm1d(dim) with dim = C * num_point

    key = jax.random.PRNGKey(0)
    kx, kg, kb = jax.random.split(key, 3)
    x = jax.random.normal(kx, (bs, c, v, t), dtype=jnp.float32)
    # Non-trivial affine params so the gamma/beta path is exercised.
    gamma = 1.0 + 0.1 * jax.random.normal(kg, (cn,), dtype=jnp.float32)
    beta = 0.1 * jax.random.normal(kb, (cn,), dtype=jnp.float32)

    y = norm_data_forward(x, gamma, beta)
    y = jax.block_until_ready(y)

    y_ref = norm_data_reference(x, gamma, beta)
    assert y.shape == (bs, c, v, t)
    assert jnp.max(jnp.abs(y - y_ref)) < 2e-4

    print("KERNEL_OK")
</pallas_src>

<mosaic_0001>
module attributes {stable_mosaic.version = 11 : i64} {
  func.func @_bn1d_fused_kernel(%arg0: i32, %arg1: memref<2x512xf32, #tpu.memory_space<vmem>>, %arg2: memref<1x512xf32, #tpu.memory_space<vmem>>, %arg3: memref<1x512xf32, #tpu.memory_space<vmem>>, %arg4: memref<512x32xf32, #tpu.memory_space<vmem>>, %arg5: memref<32x512xf32, #tpu.memory_space<vmem>>, %arg6: memref<2x512xf32, #tpu.memory_space<vmem>>) attributes {dimension_semantics = [#tpu.dimension_semantics<parallel>], iteration_bounds = array<i64: 2>, scalar_prefetch = 0 : i64, scratch_operands = 0 : i64, tpu.core_type = #tpu.core_type<tc>, window_params = [{transform_indices = @transform_0, window_bounds = array<i64: 2, 512>}, {transform_indices = @transform_1, window_bounds = array<i64: 1, 512>}, {transform_indices = @transform_2, window_bounds = array<i64: 1, 512>}, {pipeline_mode = #tpu.pipeline_mode<synchronous>, transform_indices = @transform_3, window_bounds = array<i64: 512, 32>}, {pipeline_mode = #tpu.pipeline_mode<synchronous>, transform_indices = @transform_4, window_bounds = array<i64: 32, 512>}, {transform_indices = @transform_5, window_bounds = array<i64: 2, 512>}]} {
    %c0 = arith.constant 0 : index
    %c0_0 = arith.constant 0 : index
    %0 = vector.load %arg1[%c0, %c0_0] : memref<2x512xf32, #tpu.memory_space<vmem>>, vector<2x512xf32>
    %c0_1 = arith.constant 0 : index
    %c0_2 = arith.constant 0 : index
    %1 = vector.load %arg4[%c0_1, %c0_2] : memref<512x32xf32, #tpu.memory_space<vmem>>, vector<512x32xf32>
    %c0_3 = arith.constant 0 : index
    %c0_4 = arith.constant 0 : index
    %2 = vector.load %arg5[%c0_3, %c0_4] : memref<32x512xf32, #tpu.memory_space<vmem>>, vector<32x512xf32>
    %cst = arith.constant dense<0.000000e+00> : vector<512xf32>
    %3 = vector.multi_reduction <add>, %0, %cst [0] : vector<2x512xf32> to vector<512xf32>
    %4 = vector.shape_cast %3 : vector<512xf32> to vector<1x512xf32>
    %5 = arith.mulf %0, %0 : vector<2x512xf32>
    %cst_5 = arith.constant dense<0.000000e+00> : vector<512xf32>
    %6 = vector.multi_reduction <add>, %5, %cst_5 [0] : vector<2x512xf32> to vector<512xf32>
    %7 = vector.shape_cast %6 : vector<512xf32> to vector<1x512xf32>
    %cst_6 = arith.constant dense<0.000000e+00> : vector<1x32xf32>
    %8 = tpu.matmul %4, %1, %cst_6 {dimension_numbers = #tpu.dot_dimension_numbers<[1], [0], [0], [1], [0, 0, 1, 1], [], []>} : vector<1x512xf32>, vector<512x32xf32>, vector<1x32xf32> -> vector<1x32xf32>
    %cst_7 = arith.constant dense<0.000000e+00> : vector<1x32xf32>
    %9 = tpu.matmul %7, %1, %cst_7 {dimension_numbers = #tpu.dot_dimension_numbers<[1], [0], [0], [1], [0, 0, 1, 1], [], []>} : vector<1x512xf32>, vector<512x32xf32>, vector<1x32xf32> -> vector<1x32xf32>
    %cst_8 = arith.constant 3.125000e-02 : f32
    %10 = vector.broadcast %cst_8 : f32 to vector<1x32xf32>
    %11 = arith.mulf %8, %10 : vector<1x32xf32>
    %cst_9 = arith.constant 3.125000e-02 : f32
    %12 = vector.broadcast %cst_9 : f32 to vector<1x32xf32>
    %13 = arith.mulf %9, %12 : vector<1x32xf32>
    %14 = arith.mulf %11, %11 : vector<1x32xf32>
    %15 = arith.subf %13, %14 : vector<1x32xf32>
    %cst_10 = arith.constant 0.000000e+00 : f32
    %16 = vector.broadcast %cst_10 : f32 to vector<1x32xf32>
    %17 = arith.maximumf %15, %16 : vector<1x32xf32>
    %cst_11 = arith.constant 9.99999974E-6 : f32
    %18 = vector.broadcast %cst_11 : f32 to vector<1x32xf32>
    %19 = arith.addf %17, %18 : vector<1x32xf32>
    %20 = math.rsqrt %19 : vector<1x32xf32>
    %cst_12 = arith.constant dense<0.000000e+00> : vector<1x512xf32>
    %21 = tpu.matmul %11, %2, %cst_12 {dimension_numbers = #tpu.dot_dimension_numbers<[1], [0], [0], [1], [0, 0, 1, 1], [], []>} : vector<1x32xf32>, vector<32x512xf32>, vector<1x512xf32> -> vector<1x512xf32>
    %cst_13 = arith.constant dense<0.000000e+00> : vector<1x512xf32>
    %22 = tpu.matmul %20, %2, %cst_13 {dimension_numbers = #tpu.dot_dimension_numbers<[1], [0], [0], [1], [0, 0, 1, 1], [], []>} : vector<1x32xf32>, vector<32x512xf32>, vector<1x512xf32> -> vector<1x512xf32>
    %c0_14 = arith.constant 0 : index
    %c0_15 = arith.constant 0 : index
    %23 = vector.load %arg2[%c0_14, %c0_15] : memref<1x512xf32, #tpu.memory_space<vmem>>, vector<1x512xf32>
    %c0_16 = arith.constant 0 : index
    %c0_17 = arith.constant 0 : index
    %24 = vector.load %arg3[%c0_16, %c0_17] : memref<1x512xf32, #tpu.memory_space<vmem>>, vector<1x512xf32>
    %25 = arith.mulf %23, %22 : vector<1x512xf32>
    %26 = arith.mulf %21, %25 : vector<1x512xf32>
    %27 = arith.subf %24, %26 : vector<1x512xf32>
    %28 = vector.broadcast %25 : vector<1x512xf32> to vector<2x512xf32>
    %29 = arith.mulf %0, %28 : vector<2x512xf32>
    %30 = vector.broadcast %27 : vector<1x512xf32> to vector<2x512xf32>
    %31 = arith.addf %29, %30 : vector<2x512xf32>
    %c0_18 = arith.constant 0 : index
    %c0_19 = arith.constant 0 : index
    %32 = vector.load %arg6[%c0_18, %c0_19] : memref<2x512xf32, #tpu.memory_space<vmem>>, vector<2x512xf32>
    tpu.vector_store %arg6[%c0_18, %c0_19], %31 {strides = array<i32>} : memref<2x512xf32, #tpu.memory_space<vmem>>, vector<2x512xf32>,
    return
  }
  func.func @transform_0(%arg0: i32) -> (i32, i32) {
    %c0_i32 = arith.constant 0 : i32
    %c0_i32_0 = arith.constant 0 : i32
    return %c0_i32, %arg0 : i32, i32
  }
  func.func @transform_1(%arg0: i32) -> (i32, i32) {
    %c0_i32 = arith.constant 0 : i32
    %c0_i32_0 = arith.constant 0 : i32
    return %c0_i32, %arg0 : i32, i32
  }
  func.func @transform_2(%arg0: i32) -> (i32, i32) {
    %c0_i32 = arith.constant 0 : i32
    %c0_i32_0 = arith.constant 0 : i32
    return %c0_i32, %arg0 : i32, i32
  }
  func.func @transform_3(%arg0: i32) -> (i32, i32) {
    %c0_i32 = arith.constant 0 : i32
    %c0_i32_0 = arith.constant 0 : i32
    %c0_i32_1 = arith.constant 0 : i32
    return %c0_i32, %c0_i32_0 : i32, i32
  }
  func.func @transform_4(%arg0: i32) -> (i32, i32) {
    %c0_i32 = arith.constant 0 : i32
    %c0_i32_0 = arith.constant 0 : i32
    %c0_i32_1 = arith.constant 0 : i32
    return %c0_i32, %c0_i32_0 : i32, i32
  }
  func.func @transform_5(%arg0: i32) -> (i32, i32) {
    %c0_i32 = arith.constant 0 : i32
    %c0_i32_0 = arith.constant 0 : i32
    return %c0_i32, %arg0 : i32, i32
  }
}

</mosaic_0001>

<llo_original>
// kernel: tpu_custom_call.1
$region0: #{tpu_custom_call.1}
  #allocation0 [shape = 'u32[]', space=smem, size = 0x4, offset = 0x4, fixed_abs, tag = 'smem constant byte address 0x4 - core index']
  #allocation1 [shape = 'u32[144,128]{1,0:T(1,128)}', space=vmem, size = 0x12000, scoped, tag = 'internal scratch']
  %s0 = inlined_call_operand.vmem [shape: f32[2,1024], index: 0, kind: input, shape index: {}]
  %s1 = inlined_call_operand.vmem [shape: f32[1,1024], index: 1, kind: input, shape index: {}]
  %s2 = inlined_call_operand.vmem [shape: f32[1,1024], index: 2, kind: input, shape index: {}]
  %s3 = inlined_call_operand.vmem [shape: f32[512,32], index: 3, kind: input, shape index: {}]
  %s4 = inlined_call_operand.vmem [shape: f32[32,512], index: 4, kind: input, shape index: {}]
  %s5 = inlined_call_operand.hbm [shape: f32[2,1024], index: 5, kind: output, shape index: {}]
  %s6 = sld [smem:[#allocation0]]
  $region53: #{tpu_custom_call.1} parent=0
    _
  %s8 = ssub.s32 1, %s6
  %s9 = scalar_select 0, %s8, %s6
  $region1: #{tpu_custom_call.1} parent=0
    #allocation2 [shape = 'u8[8192]{0}', space=vmem, size = 0x2000, scoped, tag = 'output window, operand 0']
    #allocation3 [shape = 's32[2]{0}', space=sflag, size = 0x8, scoped, tag = 'scoped memory for tpu_custom_call.1']
    %10 = vsyncpa [#allocation3], 0
    %s11 = scalar_lea.sflag [#allocation3], 1
    %12 = vsyncpa %s11, 0
    loop: start=0, step=1, limit=4
    $region2: #{tpu_custom_call.1} parent=1 // loop_pre_header
      _
    $region3: #{tpu_custom_call.1} parent=1 // loop_header
      %s14 = sphi 0, %s18
      %p15 = scmp.ge.s32.totalorder %s14, 4
      %s24 = sphi 0, %s26
      %s27 = sphi 0, %s24
      %s28 = sphi 0, %s27
      %s44 = sphi 0, %s28
      %s50 = sphi 0, %s52
      %s53 = sphi 0, %s50
      %s54 = sphi 0, %s53
      %s70 = sphi 0, %s54
      %s76 = sphi 0, %s78
      %s79 = sphi 0, %s76
      %s80 = sphi 0, %s79
      %s96 = sphi 0, %s80
      %s100 = sphi 0, %s100
      %s102 = sphi 0, %s100
      %s103 = sphi 0, %s102
      %s117 = sphi 0, %s103
      %s121 = sphi 0, %s121
      %s123 = sphi 0, %s121
      %s124 = sphi 0, %s123
      %s138 = sphi 0, %s124
      %s144 = sphi 0, %s146
      %s147 = sphi 0, %s144
      %s148 = sphi 0, %s147
      %s164 = sphi 0, %s148
    $region4: #{tpu_custom_call.1} parent=1 // loop_header_branch
      %17 = sbr.rel (%p15) target = $region8
    $region5: #{tpu_custom_call.1} parent=1 // loop_body
      %s19 = ssub.s32 %s14, 1
      %s20 = ssub.s32 %s14, 2
      %s21 = sadd.s32 %s14, 1
      %s22 = ssub.s32 %s14, %s21
      %p23 = scmp.eq.s32.totalorder %s22, 0
      %s25 = sadd.s32 %s24, 1
      %s26 = scalar_select %p23, %s24, %s25
      %p29 = pneg %p23
      %p30 = scmp.eq.s32.totalorder %s14, 1
      %p31 = por %p29, %p30
      %p32 = scmp.ne.s32.totalorder %s24, %s27
      %p33 = scmp.eq.s32.totalorder %s14, 0
      %p34 = por %p32, %p33
      %p35 = scmp.ne.s32.totalorder %s24, %s27
      %p36 = scmp.eq.s32.totalorder %s19, 1
      %p37 = por %p35, %p36
      %p38 = scmp.ne.s32.totalorder %s27, %s28
      %p39 = scmp.eq.s32.totalorder %s19, 0
      %p40 = por %p38, %p39
      %p41 = scmp.ne.s32.totalorder %s27, %s28
      %p42 = scmp.eq.s32.totalorder %s20, 1
      %p43 = por %p41, %p42
      %p45 = scmp.ne.s32.totalorder %s28, %s44
      %p46 = scmp.eq.s32.totalorder %s20, 0
      %p47 = por %p45, %p46
      %s48 = ssub.s32 %s14, %s21
      %p49 = scmp.eq.s32.totalorder %s48, 0
      %s51 = sadd.s32 %s50, 1
      %s52 = scalar_select %p49, %s50, %s51
      %p55 = pneg %p49
      %p56 = scmp.eq.s32.totalorder %s14, 1
      %p57 = por %p55, %p56
      %p58 = scmp.ne.s32.totalorder %s50, %s53
      %p59 = scmp.eq.s32.totalorder %s14, 0
      %p60 = por %p58, %p59
      %p61 = scmp.ne.s32.totalorder %s50, %s53
      %p62 = scmp.eq.s32.totalorder %s19, 1
      %p63 = por %p61, %p62
      %p64 = scmp.ne.s32.totalorder %s53, %s54
      %p65 = scmp.eq.s32.totalorder %s19, 0
      %p66 = por %p64, %p65
      %p67 = scmp.ne.s32.totalorder %s53, %s54
      %p68 = scmp.eq.s32.totalorder %s20, 1
      %p69 = por %p67, %p68
      %p71 = scmp.ne.s32.totalorder %s54, %s70
      %p72 = scmp.eq.s32.totalorder %s20, 0
      %p73 = por %p71, %p72
      %s74 = ssub.s32 %s14, %s21
      %p75 = scmp.eq.s32.totalorder %s74, 0
      %s77 = sadd.s32 %s76, 1
      %s78 = scalar_select %p75, %s76, %s77
      %p81 = pneg %p75
      %p82 = scmp.eq.s32.totalorder %s14, 1
      %p83 = por %p81, %p82
      %p84 = scmp.ne.s32.totalorder %s76, %s79
      %p85 = scmp.eq.s32.totalorder %s14, 0
      %p86 = por %p84, %p85
      %p87 = scmp.ne.s32.totalorder %s76, %s79
      %p88 = scmp.eq.s32.totalorder %s19, 1
      %p89 = por %p87, %p88
      %p90 = scmp.ne.s32.totalorder %s79, %s80
      %p91 = scmp.eq.s32.totalorder %s19, 0
      %p92 = por %p90, %p91
      %p93 = scmp.ne.s32.totalorder %s79, %s80
      %p94 = scmp.eq.s32.totalorder %s20, 1
      %p95 = por %p93, %p94
      %p97 = scmp.ne.s32.totalorder %s80, %s96
      %p98 = scmp.eq.s32.totalorder %s20, 0
      %p99 = por %p97, %p98
      %s101 = sadd.s32 %s100, 1
      %p104 = scmp.eq.s32.totalorder %s14, 1
      %p105 = scmp.ne.s32.totalorder %s100, %s102
      %p106 = scmp.eq.s32.totalorder %s14, 0
      %p107 = por %p105, %p106
      %p108 = scmp.ne.s32.totalorder %s100, %s102
      %p109 = scmp.eq.s32.totalorder %s19, 1
      %p110 = por %p108, %p109
      %p111 = scmp.ne.s32.totalorder %s102, %s103
      %p112 = scmp.eq.s32.totalorder %s19, 0
      %p113 = por %p111, %p112
      %p114 = scmp.ne.s32.totalorder %s102, %s103
      %p115 = scmp.eq.s32.totalorder %s20, 1
      %p116 = por %p114, %p115
      %p118 = scmp.ne.s32.totalorder %s103, %s117
      %p119 = scmp.eq.s32.totalorder %s20, 0
      %p120 = por %p118, %p119
      %s122 = sadd.s32 %s121, 1
      %p125 = scmp.eq.s32.totalorder %s14, 1
      %p126 = scmp.ne.s32.totalorder %s121, %s123
      %p127 = scmp.eq.s32.totalorder %s14, 0
      %p128 = por %p126, %p127
      %p129 = scmp.ne.s32.totalorder %s121, %s123
      %p130 = scmp.eq.s32.totalorder %s19, 1
      %p131 = por %p129, %p130
      %p132 = scmp.ne.s32.totalorder %s123, %s124
      %p133 = scmp.eq.s32.totalorder %s19, 0
      %p134 = por %p132, %p133
      %p135 = scmp.ne.s32.totalorder %s123, %s124
      %p136 = scmp.eq.s32.totalorder %s20, 1
      %p137 = por %p135, %p136
      %p139 = scmp.ne.s32.totalorder %s124, %s138
      %p140 = scmp.eq.s32.totalorder %s20, 0
      %p141 = por %p139, %p140
      %s142 = ssub.s32 %s14, %s21
      %p143 = scmp.eq.s32.totalorder %s142, 0
      %s145 = sadd.s32 %s144, 1
      %s146 = scalar_select %p143, %s144, %s145
      %p149 = pneg %p143
      %p150 = scmp.eq.s32.totalorder %s14, 1
      %p151 = por %p149, %p150
      %p152 = scmp.ne.s32.totalorder %s144, %s147
      %p153 = scmp.eq.s32.totalorder %s14, 0
      %p154 = por %p152, %p153
      %p155 = scmp.ne.s32.totalorder %s144, %s147
      %p156 = scmp.eq.s32.totalorder %s19, 1
      %p157 = por %p155, %p156
      %p158 = scmp.ne.s32.totalorder %s147, %s148
      %p159 = scmp.eq.s32.totalorder %s19, 0
      %p160 = por %p158, %p159
      %p161 = scmp.ne.s32.totalorder %s147, %s148
      %p162 = scmp.eq.s32.totalorder %s20, 1
      %p163 = por %p161, %p162
      %p165 = scmp.ne.s32.totalorder %s148, %s164
      %p166 = scmp.eq.s32.totalorder %s20, 0
      %p167 = por %p165, %p166
      %p168 = scmp.le.s32.totalorder 1, %s14
      %p169 = scmp.lt.s32.totalorder %s14, 3
      %p170 = pnand %p168, %p169
      %p171 = pneg %p170
      // Predicated region
      $region9: #{tpu_custom_call.1} parent=5 // pred_check
        _
      $region10: #{tpu_custom_call.1} parent=5 // pred_check_branch
        %173 = sbr.rel (%p170) target = $region12
      $region11: #{tpu_custom_call.1} parent=5 // pred_region
        %s174 = ssub.s32 %s14, 1
        // Predicated region
        $region13: #{tpu_custom_call.1} parent=11 // pred_check
          %p175 = pneg %p113
        $region14: #{tpu_custom_call.1} parent=11 // pred_check_branch
          %177 = sbr.rel (%p175) target = $region16
        $region15: #{tpu_custom_call.1} parent=11 // pred_region
          _
        $region16: #{tpu_custom_call.1} parent=11 // pred_fallthru
          _
        // Predicated region
        $region17: #{tpu_custom_call.1} parent=11 // pred_check
          %p178 = pneg %p134
        $region18: #{tpu_custom_call.1} parent=11 // pred_check_branch
          %180 = sbr.rel (%p178) target = $region20
        $region19: #{tpu_custom_call.1} parent=11 // pred_region
          _
        $region20: #{tpu_custom_call.1} parent=11 // pred_fallthru
          _
      $region12: #{tpu_custom_call.1} parent=5 // pred_fallthru
        _
      %p181 = scmp.lt.s32.totalorder %s14, 2
      // Predicated region
      $region21: #{tpu_custom_call.1} parent=5 // pred_check
        %p182 = pneg %p181
      $region22: #{tpu_custom_call.1} parent=5 // pred_check_branch
        %184 = sbr.rel (%p182) target = $region24
      $region23: #{tpu_custom_call.1} parent=5 // pred_region
        // Predicated region
        $region25: #{tpu_custom_call.1} parent=23 // pred_check
          %p185 = pneg %p34
        $region26: #{tpu_custom_call.1} parent=23 // pred_check_branch
          %187 = sbr.rel (%p185) target = $region28
        $region27: #{tpu_custom_call.1} parent=23 // pred_region
          %s188 = smul.u32 4, %s14
          %p189 = scmp.lt.s32.totalorder %s188, 7
          %s190 = scalar_select %p189, %s188, 7
          %s191 = smul.addr %s190, 2
          %s192 = scalar_lea.vmem %s0, %s191
          %s193 = smul.u32 4, %s14
        $region28: #{tpu_custom_call.1} parent=23 // pred_fallthru
          _
        // Predicated region
        $region29: #{tpu_custom_call.1} parent=23 // pred_check
          %p194 = pneg %p60
        $region30: #{tpu_custom_call.1} parent=23 // pred_check_branch
          %196 = sbr.rel (%p194) target = $region32
        $region31: #{tpu_custom_call.1} parent=23 // pred_region
          %s197 = smul.u32 4, %s14
          %p198 = scmp.lt.s32.totalorder %s197, 7
          %s199 = scalar_select %p198, %s197, 7
          %s200 = scalar_lea.vmem %s1, %s199
          %s201 = smul.u32 4, %s14
        $region32: #{tpu_custom_call.1} parent=23 // pred_fallthru
          _
        // Predicated region
        $region33: #{tpu_custom_call.1} parent=23 // pred_check
          %p202 = pneg %p86
        $region34: #{tpu_custom_call.1} parent=23 // pred_check_branch
          %204 = sbr.rel (%p202) target = $region36
        $region35: #{tpu_custom_call.1} parent=23 // pred_region
          %s205 = smul.u32 4, %s14
          %p206 = scmp.lt.s32.totalorder %s205, 7
          %s207 = scalar_select %p206, %s205, 7
          %s208 = scalar_lea.vmem %s2, %s207
          %s209 = smul.u32 4, %s14
        $region36: #{tpu_custom_call.1} parent=23 // pred_fallthru
          _
      $region24: #{tpu_custom_call.1} parent=5 // pred_fallthru
        _
      %p210 = scmp.le.s32.totalorder 1, %s14
      %p211 = scmp.lt.s32.totalorder %s14, 3
      %p212 = pnand %p210, %p211
      %p213 = pneg %p212
      // Predicated region
      $region37: #{tpu_custom_call.1} parent=5 // pred_check
        _
      $region38: #{tpu_custom_call.1} parent=5 // pred_check_branch
        %215 = sbr.rel (%p212) target = $region40
      $region39: #{tpu_custom_call.1} parent=5 // pred_region
        %s216 = ssub.s32 %s14, 1
        %s217 = smul.u32 4, %s19
        %p218 = scmp.lt.s32.totalorder %s217, 7
        %s219 = scalar_select %p218, %s217, 7
        %s220 = smul.addr %s219, 2
        %s221 = scalar_lea.vmem %s0, %s220
        %p222 = pneg %p40
        %p223 = pneg %p37
        %s224 = smul.u32 4, %s19
        %p225 = scmp.lt.s32.totalorder %s224, 7
        %s226 = scalar_select %p225, %s224, 7
        %s227 = scalar_lea.vmem %s1, %s226
        %p228 = pneg %p66
        %p229 = pneg %p63
        %s230 = smul.u32 4, %s19
        %p231 = scmp.lt.s32.totalorder %s230, 7
        %s232 = scalar_select %p231, %s230, 7
        %s233 = scalar_lea.vmem %s2, %s232
        %p234 = pneg %p92
        %p235 = pneg %p89
        %p236 = pneg %p113
        %p237 = pneg %p110
        %p238 = pneg %p134
        %p239 = pneg %p131
        %p240 = pneg %p160
        %p241 = pneg %p157
        %s242 = sand.u32 %s147, 1
        %s243 = scalar_lea.sflag [#allocation3], %s242
        %s244 = sand.u32 %s147, 1
        %s245 = smul.addr %s244, 8
        %s246 = scalar_lea.vmem [#allocation2], %s245
        %s247 = smul.u32 4, %s19
        %p248 = scmp.lt.s32.totalorder %s247, 7
        %s249 = scalar_select %p248, %s247, 7
        %s250 = smul.addr %s249, 2
        %s251 = scalar_lea.vmem %s0, %s250
        %s252 = smul.u32 4, %s19
        %s253 = smul.u32 4, %s19
        %p254 = scmp.lt.s32.totalorder %s253, 7
        %s255 = scalar_select %p254, %s253, 7
        %s256 = scalar_lea.vmem %s1, %s255
        %s257 = smul.u32 4, %s19
        %s258 = smul.u32 4, %s19
        %p259 = scmp.lt.s32.totalorder %s258, 7
        %s260 = scalar_select %p259, %s258, 7
        %s261 = scalar_lea.vmem %s2, %s260
        %s262 = smul.u32 4, %s19
        %s263 = smul.u32 4, %s19
        %v264 = vld [vmem:[%s251] sm:$0xff]
        %v265 = vld [vmem:[%s3] sm:$0xff]
        %v266 = vld [vmem:[%s3 + $0x8] sm:$0xff]
        %v267 = vld [vmem:[%s3 + $0x10] sm:$0xff]
        %v268 = vld [vmem:[%s3 + $0x18] sm:$0xff]
        %v269 = vld [vmem:[%s3 + $0x20] sm:$0xff]
        %v270 = vld [vmem:[%s3 + $0x28] sm:$0xff]
        %v271 = vld [vmem:[%s3 + $0x30] sm:$0xff]
        %v272 = vld [vmem:[%s3 + $0x38] sm:$0xff]
        %v273 = vld [vmem:[%s3 + $0x40] sm:$0xff]
        %v274 = vld [vmem:[%s3 + $0x48] sm:$0xff]
        %v275 = vld [vmem:[%s3 + $0x50] sm:$0xff]
        %v276 = vld [vmem:[%s3 + $0x58] sm:$0xff]
        %v277 = vld [vmem:[%s3 + $0x60] sm:$0xff]
        %v278 = vld [vmem:[%s3 + $0x68] sm:$0xff]
        %v279 = vld [vmem:[%s3 + $0x70] sm:$0xff]
        %v280 = vld [vmem:[%s3 + $0x78] sm:$0xff]
        %v281 = vld [vmem:[%s3 + $0x80] sm:$0xff]
        %v282 = vld [vmem:[%s3 + $0x88] sm:$0xff]
        %v283 = vld [vmem:[%s3 + $0x90] sm:$0xff]
        %v284 = vld [vmem:[%s3 + $0x98] sm:$0xff]
        %v285 = vld [vmem:[%s3 + $0xa0] sm:$0xff]
        %v286 = vld [vmem:[%s3 + $0xa8] sm:$0xff]
        %v287 = vld [vmem:[%s3 + $0xb0] sm:$0xff]
        %v288 = vld [vmem:[%s3 + $0xb8] sm:$0xff]
        %v289 = vld [vmem:[%s3 + $0xc0] sm:$0xff]
        %v290 = vld [vmem:[%s3 + $0xc8] sm:$0xff]
        %v291 = vld [vmem:[%s3 + $0xd0] sm:$0xff]
        %v292 = vld [vmem:[%s3 + $0xd8] sm:$0xff]
        %v293 = vld [vmem:[%s3 + $0xe0] sm:$0xff]
        %v294 = vld [vmem:[%s3 + $0xe8] sm:$0xff]
        %v295 = vld [vmem:[%s3 + $0xf0] sm:$0xff]
        %v296 = vld [vmem:[%s3 + $0xf8] sm:$0xff]
        %v297 = vld [vmem:[%s3 + $0x100] sm:$0xff]
        %v298 = vld [vmem:[%s3 + $0x108] sm:$0xff]
        %v299 = vld [vmem:[%s3 + $0x110] sm:$0xff]
        %v300 = vld [vmem:[%s3 + $0x118] sm:$0xff]
        %v301 = vld [vmem:[%s3 + $0x120] sm:$0xff]
        %v302 = vld [vmem:[%s3 + $0x128] sm:$0xff]
        %v303 = vld [vmem:[%s3 + $0x130] sm:$0xff]
        %v304 = vld [vmem:[%s3 + $0x138] sm:$0xff]
        %v305 = vld [vmem:[%s3 + $0x140] sm:$0xff]
        %v306 = vld [vmem:[%s3 + $0x148] sm:$0xff]
        %v307 = vld [vmem:[%s3 + $0x150] sm:$0xff]
        %v308 = vld [vmem:[%s3 + $0x158] sm:$0xff]
        %v309 = vld [vmem:[%s3 + $0x160] sm:$0xff]
        %v310 = vld [vmem:[%s3 + $0x168] sm:$0xff]
        %v311 = vld [vmem:[%s3 + $0x170] sm:$0xff]
        %v312 = vld [vmem:[%s3 + $0x178] sm:$0xff]
        %v313 = vld [vmem:[%s3 + $0x180] sm:$0xff]
        %v314 = vld [vmem:[%s3 + $0x188] sm:$0xff]
        %v315 = vld [vmem:[%s3 + $0x190] sm:$0xff]
        %v316 = vld [vmem:[%s3 + $0x198] sm:$0xff]
        %v317 = vld [vmem:[%s3 + $0x1a0] sm:$0xff]
        %v318 = vld [vmem:[%s3 + $0x1a8] sm:$0xff]
        %v319 = vld [vmem:[%s3 + $0x1b0] sm:$0xff]
        %v320 = vld [vmem:[%s3 + $0x1b8] sm:$0xff]
        %v321 = vld [vmem:[%s3 + $0x1c0] sm:$0xff]
        %v322 = vld [vmem:[%s3 + $0x1c8] sm:$0xff]
        %v323 = vld [vmem:[%s3 + $0x1d0] sm:$0xff]
        %v324 = vld [vmem:[%s3 + $0x1d8] sm:$0xff]
        %v325 = vld [vmem:[%s3 + $0x1e0] sm:$0xff]
        %v326 = vld [vmem:[%s3 + $0x1e8] sm:$0xff]
        %v327 = vld [vmem:[%s3 + $0x1f0] sm:$0xff]
        %v328 = vld [vmem:[%s3 + $0x1f8] sm:$0xff]
        %v329 = vld [vmem:[%s4] sm:$0xff]
        %v330 = vld [vmem:[%s4 + $0x8] sm:$0xff]
        %v331 = vld [vmem:[%s4 + $0x10] sm:$0xff]
        %v332 = vld [vmem:[%s4 + $0x18] sm:$0xff]
        %v333 = vld [vmem:[%s4 + $0x20] sm:$0xff]
        %v334 = vld [vmem:[%s4 + $0x28] sm:$0xff]
        %v335 = vld [vmem:[%s4 + $0x30] sm:$0xff]
        %v336 = vld [vmem:[%s4 + $0x38] sm:$0xff]
        %v337 = vld [vmem:[%s4 + $0x40] sm:$0xff]
        %v338 = vld [vmem:[%s4 + $0x48] sm:$0xff]
        %v339 = vld [vmem:[%s4 + $0x50] sm:$0xff]
        %v340 = vld [vmem:[%s4 + $0x58] sm:$0xff]
        %v341 = vld [vmem:[%s4 + $0x60] sm:$0xff]
        %v342 = vld [vmem:[%s4 + $0x68] sm:$0xff]
        %v343 = vld [vmem:[%s4 + $0x70] sm:$0xff]
        %v344 = vld [vmem:[%s4 + $0x78] sm:$0xff]
        %v346 = vcombine.high %v264, %v264
        %v348 = vunpack.c.l.s4 1983009808
        %v349 = vunpack.c.0.s8 %v348
        %v350 = vlaneseq
        %v351 = vshrl.u32 %v350, 7
        %v352 = vsub.s32 %v349, %v351
        %v353 = vrot.slane %v264, %v352
        %v355 = vunpack.c.l.s4 1983009808
        %v356 = vunpack.c.0.s8 %v355
        %v357 = vlaneseq
        %v358 = vshrl.u32 %v357, 7
        %v359 = vsub.s32 %v356, %v358
        %v360 = vrot.slane %v346, %v359
        %v361 = vcombine.high %v353, %v353
        %v362 = vcombine.high %v360, %v360
        %vm367 = vcmask 1041408
        %v368 = vsel %vm367, %v353, 0.0
        %v369 = vrot.slane %v368, 4
        %v370 = vadd.f32 %v368, %v369
        %v371 = vrot.slane %v370, 2
        %v372 = vadd.f32 %v370, %v371
        %v373 = vrot.slane %v372, 1
        %v374 = vadd.f32 %v372, %v373
        %v375 = vsel %vm367, %v361, 0.0
        %v376 = vrot.slane %v375, 4
        %v377 = vadd.f32 %v375, %v376
        %v378 = vrot.slane %v377, 2
        %v379 = vadd.f32 %v377, %v378
        %v380 = vrot.slane %v379, 1
        %v381 = vadd.f32 %v379, %v380
        %v382 = vsel %vm367, %v360, 0.0
        %v383 = vrot.slane %v382, 4
        %v384 = vadd.f32 %v382, %v383
        %v385 = vrot.slane %v384, 2
        %v386 = vadd.f32 %v384, %v385
        %v387 = vrot.slane %v386, 1
        %v388 = vadd.f32 %v386, %v387
        %v389 = vsel %vm367, %v362, 0.0
        %v390 = vrot.slane %v389, 4
        %v391 = vadd.f32 %v389, %v390
        %v392 = vrot.slane %v391, 2
        %v393 = vadd.f32 %v391, %v392
        %v394 = vrot.slane %v393, 1
        %v395 = vadd.f32 %v393, %v394
        %v396 = vmul.f32 %v264, %v264
        %v398 = vcombine.high %v396, %v396
        %v400 = vunpack.c.l.s4 1983009808
        %v401 = vunpack.c.0.s8 %v400
        %v402 = vlaneseq
        %v403 = vshrl.u32 %v402, 7
        %v404 = vsub.s32 %v401, %v403
        %v405 = vrot.slane %v396, %v404
        %v407 = vunpack.c.l.s4 1983009808
        %v408 = vunpack.c.0.s8 %v407
        %v409 = vlaneseq
        %v410 = vshrl.u32 %v409, 7
        %v411 = vsub.s32 %v408, %v410
        %v412 = vrot.slane %v398, %v411
        %v413 = vcombine.high %v405, %v405
        %v414 = vcombine.high %v412, %v412
        %v419 = vsel %vm367, %v405, 0.0
        %v420 = vrot.slane %v419, 4
        %v421 = vadd.f32 %v419, %v420
        %v422 = vrot.slane %v421, 2
        %v423 = vadd.f32 %v421, %v422
        %v424 = vrot.slane %v423, 1
        %v425 = vadd.f32 %v423, %v424
        %v426 = vsel %vm367, %v413, 0.0
        %v427 = vrot.slane %v426, 4
        %v428 = vadd.f32 %v426, %v427
        %v429 = vrot.slane %v428, 2
        %v430 = vadd.f32 %v428, %v429
        %v431 = vrot.slane %v430, 1
        %v432 = vadd.f32 %v430, %v431
        %v433 = vsel %vm367, %v412, 0.0
        %v434 = vrot.slane %v433, 4
        %v435 = vadd.f32 %v433, %v434
        %v436 = vrot.slane %v435, 2
        %v437 = vadd.f32 %v435, %v436
        %v438 = vrot.slane %v437, 1
        %v439 = vadd.f32 %v437, %v438
        %v440 = vsel %vm367, %v414, 0.0
        %v441 = vrot.slane %v440, 4
        %v442 = vadd.f32 %v440, %v441
        %v443 = vrot.slane %v442, 2
        %v444 = vadd.f32 %v442, %v443
        %v445 = vrot.slane %v444, 1
        %v446 = vadd.f32 %v444, %v445
        %447 = vmatprep.subr.mxu0 0.0
        %448 = vmatpush1.msra.mxu0 %v265
        %449 = vmatprep.subr.mxu0 0.0
        %450 = vmatpush1.msra.mxu0 %v266
        %451 = vmatprep.subr.mxu0 0.0
        %452 = vmatpush1.msra.mxu0 %v267
        %453 = vmatprep.subr.mxu0 0.0
        %454 = vmatpush1.msra.mxu0 %v268
        %455 = vmatprep.subr.mxu0 0.0
        %456 = vmatpush1.msra.mxu0 %v269
        %457 = vmatprep.subr.mxu0 0.0
        %458 = vmatpush1.msra.mxu0 %v270
        %459 = vmatprep.subr.mxu0 0.0
        %460 = vmatpush1.msra.mxu0 %v271
        %461 = vmatprep.subr.mxu0 0.0
        %462 = vmatpush1.msra.mxu0 %v272
        %463 = vmatprep.subr.mxu0 0.0
        %464 = vmatpush1.msra.mxu0 %v273
        %465 = vmatprep.subr.mxu0 0.0
        %466 = vmatpush1.msra.mxu0 %v274
        %467 = vmatprep.subr.mxu0 0.0
        %468 = vmatpush1.msra.mxu0 %v275
        %469 = vmatprep.subr.mxu0 0.0
        %470 = vmatpush1.msra.mxu0 %v276
        %471 = vmatprep.subr.mxu0 0.0
        %472 = vmatpush1.msra.mxu0 %v277
        %473 = vmatprep.subr.mxu0 0.0
        %474 = vmatpush1.msra.mxu0 %v278
        %475 = vmatprep.subr.mxu0 0.0
        %476 = vmatpush1.msra.mxu0 %v279
        %477 = vmatprep.subr.mxu0 0.0
        %478 = vmatpush1.msra.mxu0 %v280
        %479 = vmatprep.subr.mxu0 0.0
        %480 = vmatpush1.msra.mxu0 %v281
        %481 = vmatprep.subr.mxu0 0.0
        %482 = vmatpush1.msra.mxu0 %v282
        %483 = vmatprep.subr.mxu0 0.0
        %484 = vmatpush1.msra.mxu0 %v283
        %485 = vmatprep.subr.mxu0 0.0
        %486 = vmatpush1.msra.mxu0 %v284
        %487 = vmatprep.subr.mxu0 0.0
        %488 = vmatpush1.msra.mxu0 %v285
        %489 = vmatprep.subr.mxu0 0.0
        %490 = vmatpush1.msra.mxu0 %v286
        %491 = vmatprep.subr.mxu0 0.0
        %492 = vmatpush1.msra.mxu0 %v287
        %493 = vmatprep.subr.mxu0 0.0
        %494 = vmatpush1.msra.mxu0 %v288
        %495 = vmatprep.subr.mxu0 0.0
        %496 = vmatpush1.msra.mxu0 %v289
        %497 = vmatprep.subr.mxu0 0.0
        %498 = vmatpush1.msra.mxu0 %v290
        %499 = vmatprep.subr.mxu0 0.0
        %500 = vmatpush1.msra.mxu0 %v291
        %501 = vmatprep.subr.mxu0 0.0
        %502 = vmatpush1.msra.mxu0 %v292
        %503 = vmatprep.subr.mxu0 0.0
        %504 = vmatpush1.msra.mxu0 %v293
        %505 = vmatprep.subr.mxu0 0.0
        %506 = vmatpush1.msra.mxu0 %v294
        %507 = vmatprep.subr.mxu0 0.0
        %508 = vmatpush1.msra.mxu0 %v295
        %509 = vmatprep.subr.mxu0 0.0
        %510 = vmatpush1.msra.mxu0 %v296
        %511 = vmatprep.mubr.f32.mxu0 %v381
        %512 = vmatmul.mubr.f32.gmra.mrb[0].mxu0 %v374
        %v513 = vpop.f32.mrb[0].mxu0
        %v514 = vadd.f32 0.0, %v513
        %v515 = vpop.f32.mrb[0].mxu0
        %516 = vdwg.mxu0
        %517 = vmatprep.subr.mxu0 0.0
        %518 = vmatpush1.msra.mxu0 %v297
        %519 = vmatprep.subr.mxu0 0.0
        %520 = vmatpush1.msra.mxu0 %v298
        %521 = vmatprep.subr.mxu0 0.0
        %522 = vmatpush1.msra.mxu0 %v299
        %523 = vmatprep.subr.mxu0 0.0
        %524 = vmatpush1.msra.mxu0 %v300
        %525 = vmatprep.subr.mxu0 0.0
        %526 = vmatpush1.msra.mxu0 %v301
        %527 = vmatprep.subr.mxu0 0.0
        %528 = vmatpush1.msra.mxu0 %v302
        %529 = vmatprep.subr.mxu0 0.0
        %530 = vmatpush1.msra.mxu0 %v303
        %531 = vmatprep.subr.mxu0 0.0
        %532 = vmatpush1.msra.mxu0 %v304
        %533 = vmatprep.subr.mxu0 0.0
        %534 = vmatpush1.msra.mxu0 %v305
        %535 = vmatprep.subr.mxu0 0.0
        %536 = vmatpush1.msra.mxu0 %v306
        %537 = vmatprep.subr.mxu0 0.0
        %538 = vmatpush1.msra.mxu0 %v307
        %539 = vmatprep.subr.mxu0 0.0
        %540 = vmatpush1.msra.mxu0 %v308
        %541 = vmatprep.subr.mxu0 0.0
        %542 = vmatpush1.msra.mxu0 %v309
        %543 = vmatprep.subr.mxu0 0.0
        %544 = vmatpush1.msra.mxu0 %v310
        %545 = vmatprep.subr.mxu0 0.0
        %546 = vmatpush1.msra.mxu0 %v311
        %547 = vmatprep.subr.mxu0 0.0
        %548 = vmatpush1.msra.mxu0 %v312
        %549 = vmatprep.subr.mxu0 0.0
        %550 = vmatpush1.msra.mxu0 %v313
        %551 = vmatprep.subr.mxu0 0.0
        %552 = vmatpush1.msra.mxu0 %v314
        %553 = vmatprep.subr.mxu0 0.0
        %554 = vmatpush1.msra.mxu0 %v315
        %555 = vmatprep.subr.mxu0 0.0
        %556 = vmatpush1.msra.mxu0 %v316
        %557 = vmatprep.subr.mxu0 0.0
        %558 = vmatpush1.msra.mxu0 %v317
        %559 = vmatprep.subr.mxu0 0.0
        %560 = vmatpush1.msra.mxu0 %v318
        %561 = vmatprep.subr.mxu0 0.0
        %562 = vmatpush1.msra.mxu0 %v319
        %563 = vmatprep.subr.mxu0 0.0
        %564 = vmatpush1.msra.mxu0 %v320
        %565 = vmatprep.subr.mxu0 0.0
        %566 = vmatpush1.msra.mxu0 %v321
        %567 = vmatprep.subr.mxu0 0.0
        %568 = vmatpush1.msra.mxu0 %v322
        %569 = vmatprep.subr.mxu0 0.0
        %570 = vmatpush1.msra.mxu0 %v323
        %571 = vmatprep.subr.mxu0 0.0
        %572 = vmatpush1.msra.mxu0 %v324
        %573 = vmatprep.subr.mxu0 0.0
        %574 = vmatpush1.msra.mxu0 %v325
        %575 = vmatprep.subr.mxu0 0.0
        %576 = vmatpush1.msra.mxu0 %v326
        %577 = vmatprep.subr.mxu0 0.0
        %578 = vmatpush1.msra.mxu0 %v327
        %579 = vmatprep.subr.mxu0 0.0
        %580 = vmatpush1.msra.mxu0 %v328
        %581 = vmatprep.mubr.f32.mxu0 %v395
        %582 = vmatmul.mubr.f32.gmra.mrb[0].mxu0 %v388
        %v583 = vpop.f32.mrb[0].mxu0
        %v584 = vadd.f32 %v514, %v583
        %v585 = vpop.f32.mrb[0].mxu0
        %586 = vdwg.mxu0
        %587 = vmatprep.subr.mxu0 0.0
        %588 = vmatpush1.msra.mxu0 %v265
        %589 = vmatprep.subr.mxu0 0.0
        %590 = vmatpush1.msra.mxu0 %v266
        %591 = vmatprep.subr.mxu0 0.0
        %592 = vmatpush1.msra.mxu0 %v267
        %593 = vmatprep.subr.mxu0 0.0
        %594 = vmatpush1.msra.mxu0 %v268
        %595 = vmatprep.subr.mxu0 0.0
        %596 = vmatpush1.msra.mxu0 %v269
        %597 = vmatprep.subr.mxu0 0.0
        %598 = vmatpush1.msra.mxu0 %v270
        %599 = vmatprep.subr.mxu0 0.0
        %600 = vmatpush1.msra.mxu0 %v271
        %601 = vmatprep.subr.mxu0 0.0
        %602 = vmatpush1.msra.mxu0 %v272
        %603 = vmatprep.subr.mxu0 0.0
        %604 = vmatpush1.msra.mxu0 %v273
        %605 = vmatprep.subr.mxu0 0.0
        %606 = vmatpush1.msra.mxu0 %v274
        %607 = vmatprep.subr.mxu0 0.0
        %608 = vmatpush1.msra.mxu0 %v275
        %609 = vmatprep.subr.mxu0 0.0
        %610 = vmatpush1.msra.mxu0 %v276
        %611 = vmatprep.subr.mxu0 0.0
        %612 = vmatpush1.msra.mxu0 %v277
        %613 = vmatprep.subr.mxu0 0.0
        %614 = vmatpush1.msra.mxu0 %v278
        %615 = vmatprep.subr.mxu0 0.0
        %616 = vmatpush1.msra.mxu0 %v279
        %617 = vmatprep.subr.mxu0 0.0
        %618 = vmatpush1.msra.mxu0 %v280
        %619 = vmatprep.subr.mxu0 0.0
        %620 = vmatpush1.msra.mxu0 %v281
        %621 = vmatprep.subr.mxu0 0.0
        %622 = vmatpush1.msra.mxu0 %v282
        %623 = vmatprep.subr.mxu0 0.0
        %624 = vmatpush1.msra.mxu0 %v283
        %625 = vmatprep.subr.mxu0 0.0
        %626 = vmatpush1.msra.mxu0 %v284
        %627 = vmatprep.subr.mxu0 0.0
        %628 = vmatpush1.msra.mxu0 %v285
        %629 = vmatprep.subr.mxu0 0.0
        %630 = vmatpush1.msra.mxu0 %v286
        %631 = vmatprep.subr.mxu0 0.0
        %632 = vmatpush1.msra.mxu0 %v287
        %633 = vmatprep.subr.mxu0 0.0
        %634 = vmatpush1.msra.mxu0 %v288
        %635 = vmatprep.subr.mxu0 0.0
        %636 = vmatpush1.msra.mxu0 %v289
        %637 = vmatprep.subr.mxu0 0.0
        %638 = vmatpush1.msra.mxu0 %v290
        %639 = vmatprep.subr.mxu0 0.0
        %640 = vmatpush1.msra.mxu0 %v291
        %641 = vmatprep.subr.mxu0 0.0
        %642 = vmatpush1.msra.mxu0 %v292
        %643 = vmatprep.subr.mxu0 0.0
        %644 = vmatpush1.msra.mxu0 %v293
        %645 = vmatprep.subr.mxu0 0.0
        %646 = vmatpush1.msra.mxu0 %v294
        %647 = vmatprep.subr.mxu0 0.0
        %648 = vmatpush1.msra.mxu0 %v295
        %649 = vmatprep.subr.mxu0 0.0
        %650 = vmatpush1.msra.mxu0 %v296
        %651 = vmatprep.mubr.f32.mxu0 %v432
        %652 = vmatmul.mubr.f32.gmra.mrb[0].mxu0 %v425
        %v653 = vpop.f32.mrb[0].mxu0
        %v654 = vadd.f32 0.0, %v653
        %v655 = vpop.f32.mrb[0].mxu0
        %656 = vdwg.mxu0
        %657 = vmatprep.subr.mxu0 0.0
        %658 = vmatpush1.msra.mxu0 %v297
        %659 = vmatprep.subr.mxu0 0.0
        %660 = vmatpush1.msra.mxu0 %v298
        %661 = vmatprep.subr.mxu0 0.0
        %662 = vmatpush1.msra.mxu0 %v299
        %663 = vmatprep.subr.mxu0 0.0
        %664 = vmatpush1.msra.mxu0 %v300
        %665 = vmatprep.subr.mxu0 0.0
        %666 = vmatpush1.msra.mxu0 %v301
        %667 = vmatprep.subr.mxu0 0.0
        %668 = vmatpush1.msra.mxu0 %v302
        %669 = vmatprep.subr.mxu0 0.0
        %670 = vmatpush1.msra.mxu0 %v303
        %671 = vmatprep.subr.mxu0 0.0
        %672 = vmatpush1.msra.mxu0 %v304
        %673 = vmatprep.subr.mxu0 0.0
        %674 = vmatpush1.msra.mxu0 %v305
        %675 = vmatprep.subr.mxu0 0.0
        %676 = vmatpush1.msra.mxu0 %v306
        %677 = vmatprep.subr.mxu0 0.0
        %678 = vmatpush1.msra.mxu0 %v307
        %679 = vmatprep.subr.mxu0 0.0
        %680 = vmatpush1.msra.mxu0 %v308
        %681 = vmatprep.subr.mxu0 0.0
        %682 = vmatpush1.msra.mxu0 %v309
        %683 = vmatprep.subr.mxu0 0.0
        %684 = vmatpush1.msra.mxu0 %v310
        %685 = vmatprep.subr.mxu0 0.0
        %686 = vmatpush1.msra.mxu0 %v311
        %687 = vmatprep.subr.mxu0 0.0
        %688 = vmatpush1.msra.mxu0 %v312
        %689 = vmatprep.subr.mxu0 0.0
        %690 = vmatpush1.msra.mxu0 %v313
        %691 = vmatprep.subr.mxu0 0.0
        %692 = vmatpush1.msra.mxu0 %v314
        %693 = vmatprep.subr.mxu0 0.0
        %694 = vmatpush1.msra.mxu0 %v315
        %695 = vmatprep.subr.mxu0 0.0
        %696 = vmatpush1.msra.mxu0 %v316
        %697 = vmatprep.subr.mxu0 0.0
        %698 = vmatpush1.msra.mxu0 %v317
        %699 = vmatprep.subr.mxu0 0.0
        %700 = vmatpush1.msra.mxu0 %v318
        %701 = vmatprep.subr.mxu0 0.0
        %702 = vmatpush1.msra.mxu0 %v319
        %703 = vmatprep.subr.mxu0 0.0
        %704 = vmatpush1.msra.mxu0 %v320
        %705 = vmatprep.subr.mxu0 0.0
        %706 = vmatpush1.msra.mxu0 %v321
        %707 = vmatprep.subr.mxu0 0.0
        %708 = vmatpush1.msra.mxu0 %v322
        %709 = vmatprep.subr.mxu0 0.0
        %710 = vmatpush1.msra.mxu0 %v323
        %711 = vmatprep.subr.mxu0 0.0
        %712 = vmatpush1.msra.mxu0 %v324
        %713 = vmatprep.subr.mxu0 0.0
        %714 = vmatpush1.msra.mxu0 %v325
        %715 = vmatprep.subr.mxu0 0.0
        %716 = vmatpush1.msra.mxu0 %v326
        %717 = vmatprep.subr.mxu0 0.0
        %718 = vmatpush1.msra.mxu0 %v327
        %719 = vmatprep.subr.mxu0 0.0
        %720 = vmatpush1.msra.mxu0 %v328
        %721 = vmatprep.mubr.f32.mxu0 %v446
        %722 = vmatmul.mubr.f32.gmra.mrb[0].mxu0 %v439
        %v723 = vpop.f32.mrb[0].mxu0
        %v724 = vadd.f32 %v654, %v723
        %v725 = vpop.f32.mrb[0].mxu0
        %726 = vdwg.mxu0
        %v727 = vmul.f32 %v584, 0.03125
        %v728 = vmul.f32 %v724, 0.03125
        %v729 = vmul.f32 %v727, %v727
        %v730 = vsub.f32 %v728, %v729
        %v731 = vmax.f32 %v730, 0.0
        %v732 = vadd.f32 %v731, 1e-05
        %v733 = vrsqrt.pop %v732
        %vm734 = vcmask 261120
        %v736 = vsel %vm734, %v727, 0
        %738 = vmatprep.subr.mxu0 %v330
        %739 = vmatpush1.msra.mxu0 %v329
        %740 = vmatprep.subr.mxu0 %v334
        %741 = vmatpush1.msra.mxu0 %v333
        %742 = vmatprep.subr.mxu0 %v338
        %743 = vmatpush1.msra.mxu0 %v337
        %744 = vmatprep.subr.mxu0 %v342
        %745 = vmatpush1.msra.mxu0 %v341
        %746 = vmatprep.subr.mxu0 0.0
        %747 = vmatpush1.msra.mxu0 0.0
        %748 = vmatprep.subr.mxu0 0.0
        %749 = vmatpush1.msra.mxu0 0.0
        %750 = vmatprep.subr.mxu0 0.0
        %751 = vmatpush1.msra.mxu0 0.0
        %752 = vmatprep.subr.mxu0 0.0
        %753 = vmatpush1.msra.mxu0 0.0
        %754 = vmatprep.subr.mxu0 0.0
        %755 = vmatpush1.msra.mxu0 0.0
        %756 = vmatprep.subr.mxu0 0.0
        %757 = vmatpush1.msra.mxu0 0.0
        %758 = vmatprep.subr.mxu0 0.0
        %759 = vmatpush1.msra.mxu0 0.0
        %760 = vmatprep.subr.mxu0 0.0
        %761 = vmatpush1.msra.mxu0 0.0
        %762 = vmatprep.subr.mxu0 0.0
        %763 = vmatpush1.msra.mxu0 0.0
        %764 = vmatprep.subr.mxu0 0.0
        %765 = vmatpush1.msra.mxu0 0.0
        %766 = vmatprep.subr.mxu0 0.0
        %767 = vmatpush1.msra.mxu0 0.0
        %768 = vmatprep.subr.mxu0 0.0
        %769 = vmatpush1.msra.mxu0 0.0
        %770 = vmatprep.subr.mxu0 0.0
        %771 = vmatpush1.msra.mxu0 0.0
        %772 = vmatprep.subr.mxu0 0.0
        %773 = vmatpush1.msra.mxu0 0.0
        %774 = vmatprep.subr.mxu0 0.0
        %775 = vmatpush1.msra.mxu0 0.0
        %776 = vmatprep.subr.mxu0 0.0
        %777 = vmatpush1.msra.mxu0 0.0
        %778 = vmatprep.subr.mxu0 0.0
        %779 = vmatpush1.msra.mxu0 0.0
        %780 = vmatprep.subr.mxu0 0.0
        %781 = vmatpush1.msra.mxu0 0.0
        %782 = vmatprep.subr.mxu0 0.0
        %783 = vmatpush1.msra.mxu0 0.0
        %784 = vmatprep.subr.mxu0 0.0
        %785 = vmatpush1.msra.mxu0 0.0
        %786 = vmatprep.subr.mxu0 0.0
        %787 = vmatpush1.msra.mxu0 0.0
        %788 = vmatprep.subr.mxu0 0.0
        %789 = vmatpush1.msra.mxu0 0.0
        %790 = vmatprep.subr.mxu0 0.0
        %791 = vmatpush1.msra.mxu0 0.0
        %792 = vmatprep.subr.mxu0 0.0
        %793 = vmatpush1.msra.mxu0 0.0
        %794 = vmatprep.subr.mxu0 0.0
        %795 = vmatpush1.msra.mxu0 0.0
        %796 = vmatprep.subr.mxu0 0.0
        %797 = vmatpush1.msra.mxu0 0.0
        %798 = vmatprep.subr.mxu0 0.0
        %799 = vmatpush1.msra.mxu0 0.0
        %800 = vmatprep.subr.mxu0 0.0
        %801 = vmatpush1.msra.mxu0 0.0
        %802 = vmatprep.mubr.f32.mxu0 0.0
        %803 = vmatmul.mubr.f32.gmra.mrb[0].mxu0 %v736
        %v804 = vpop.f32.mrb[0].mxu0
        %v805 = vadd.f32 0.0, %v804
        %v806 = vpop.f32.mrb[0].mxu0
        %v807 = vadd.f32 0.0, %v806
        %808 = vdwg.mxu0
        %809 = vmatprep.subr.mxu0 %v332
        %810 = vmatpush1.msra.mxu0 %v331
        %811 = vmatprep.subr.mxu0 %v336
        %812 = vmatpush1.msra.mxu0 %v335
        %813 = vmatprep.subr.mxu0 %v340
        %814 = vmatpush1.msra.mxu0 %v339
        %815 = vmatprep.subr.mxu0 %v344
        %816 = vmatpush1.msra.mxu0 %v343
        %817 = vmatprep.subr.mxu0 0.0
        %818 = vmatpush1.msra.mxu0 0.0
        %819 = vmatprep.subr.mxu0 0.0
        %820 = vmatpush1.msra.mxu0 0.0
        %821 = vmatprep.subr.mxu0 0.0
        %822 = vmatpush1.msra.mxu0 0.0
        %823 = vmatprep.subr.mxu0 0.0
        %824 = vmatpush1.msra.mxu0 0.0
        %825 = vmatprep.subr.mxu0 0.0
        %826 = vmatpush1.msra.mxu0 0.0
        %827 = vmatprep.subr.mxu0 0.0
        %828 = vmatpush1.msra.mxu0 0.0
        %829 = vmatprep.subr.mxu0 0.0
        %830 = vmatpush1.msra.mxu0 0.0
        %831 = vmatprep.subr.mxu0 0.0
        %832 = vmatpush1.msra.mxu0 0.0
        %833 = vmatprep.subr.mxu0 0.0
        %834 = vmatpush1.msra.mxu0 0.0
        %835 = vmatprep.subr.mxu0 0.0
        %836 = vmatpush1.msra.mxu0 0.0
        %837 = vmatprep.subr.mxu0 0.0
        %838 = vmatpush1.msra.mxu0 0.0
        %839 = vmatprep.subr.mxu0 0.0
        %840 = vmatpush1.msra.mxu0 0.0
        %841 = vmatprep.subr.mxu0 0.0
        %842 = vmatpush1.msra.mxu0 0.0
        %843 = vmatprep.subr.mxu0 0.0
        %844 = vmatpush1.msra.mxu0 0.0
        %845 = vmatprep.subr.mxu0 0.0
        %846 = vmatpush1.msra.mxu0 0.0
        %847 = vmatprep.subr.mxu0 0.0
        %848 = vmatpush1.msra.mxu0 0.0
        %849 = vmatprep.subr.mxu0 0.0
        %850 = vmatpush1.msra.mxu0 0.0
        %851 = vmatprep.subr.mxu0 0.0
        %852 = vmatpush1.msra.mxu0 0.0
        %853 = vmatprep.subr.mxu0 0.0
        %854 = vmatpush1.msra.mxu0 0.0
        %855 = vmatprep.subr.mxu0 0.0
        %856 = vmatpush1.msra.mxu0 0.0
        %857 = vmatprep.subr.mxu0 0.0
        %858 = vmatpush1.msra.mxu0 0.0
        %859 = vmatprep.subr.mxu0 0.0
        %860 = vmatpush1.msra.mxu0 0.0
        %861 = vmatprep.subr.mxu0 0.0
        %862 = vmatpush1.msra.mxu0 0.0
        %863 = vmatprep.subr.mxu0 0.0
        %864 = vmatpush1.msra.mxu0 0.0
        %865 = vmatprep.subr.mxu0 0.0
        %866 = vmatpush1.msra.mxu0 0.0
        %867 = vmatprep.subr.mxu0 0.0
        %868 = vmatpush1.msra.mxu0 0.0
        %869 = vmatprep.subr.mxu0 0.0
        %870 = vmatpush1.msra.mxu0 0.0
        %871 = vmatprep.subr.mxu0 0.0
        %872 = vmatpush1.msra.mxu0 0.0
        %873 = vmatprep.mubr.f32.mxu0 0.0
        %874 = vmatmul.mubr.f32.gmra.mrb[0].mxu0 %v736
        %v875 = vpop.f32.mrb[0].mxu0
        %v876 = vadd.f32 0.0, %v875
        %v877 = vpop.f32.mrb[0].mxu0
        %v878 = vadd.f32 0.0, %v877
        %879 = vdwg.mxu0
        %v881 = vsel %vm734, %v733, 0
        %883 = vmatprep.subr.mxu0 %v330
        %884 = vmatpush1.msra.mxu0 %v329
        %885 = vmatprep.subr.mxu0 %v334
        %886 = vmatpush1.msra.mxu0 %v333
        %887 = vmatprep.subr.mxu0 %v338
        %888 = vmatpush1.msra.mxu0 %v337
        %889 = vmatprep.subr.mxu0 %v342
        %890 = vmatpush1.msra.mxu0 %v341
        %891 = vmatprep.subr.mxu0 0.0
        %892 = vmatpush1.msra.mxu0 0.0
        %893 = vmatprep.subr.mxu0 0.0
        %894 = vmatpush1.msra.mxu0 0.0
        %895 = vmatprep.subr.mxu0 0.0
        %896 = vmatpush1.msra.mxu0 0.0
        %897 = vmatprep.subr.mxu0 0.0
        %898 = vmatpush1.msra.mxu0 0.0
        %899 = vmatprep.subr.mxu0 0.0
        %900 = vmatpush1.msra.mxu0 0.0
        %901 = vmatprep.subr.mxu0 0.0
        %902 = vmatpush1.msra.mxu0 0.0
        %903 = vmatprep.subr.mxu0 0.0
        %904 = vmatpush1.msra.mxu0 0.0
        %905 = vmatprep.subr.mxu0 0.0
        %906 = vmatpush1.msra.mxu0 0.0
        %907 = vmatprep.subr.mxu0 0.0
        %908 = vmatpush1.msra.mxu0 0.0
        %909 = vmatprep.subr.mxu0 0.0
        %910 = vmatpush1.msra.mxu0 0.0
        %911 = vmatprep.subr.mxu0 0.0
        %912 = vmatpush1.msra.mxu0 0.0
        %913 = vmatprep.subr.mxu0 0.0
        %914 = vmatpush1.msra.mxu0 0.0
        %915 = vmatprep.subr.mxu0 0.0
        %916 = vmatpush1.msra.mxu0 0.0
        %917 = vmatprep.subr.mxu0 0.0
        %918 = vmatpush1.msra.mxu0 0.0
        %919 = vmatprep.subr.mxu0 0.0
        %920 = vmatpush1.msra.mxu0 0.0
        %921 = vmatprep.subr.mxu0 0.0
        %922 = vmatpush1.msra.mxu0 0.0
        %923 = vmatprep.subr.mxu0 0.0
        %924 = vmatpush1.msra.mxu0 0.0
        %925 = vmatprep.subr.mxu0 0.0
        %926 = vmatpush1.msra.mxu0 0.0
        %927 = vmatprep.subr.mxu0 0.0
        %928 = vmatpush1.msra.mxu0 0.0
        %929 = vmatprep.subr.mxu0 0.0
        %930 = vmatpush1.msra.mxu0 0.0
        %931 = vmatprep.subr.mxu0 0.0
        %932 = vmatpush1.msra.mxu0 0.0
        %933 = vmatprep.subr.mxu0 0.0
        %934 = vmatpush1.msra.mxu0 0.0
        %935 = vmatprep.subr.mxu0 0.0
        %936 = vmatpush1.msra.mxu0 0.0
        %937 = vmatprep.subr.mxu0 0.0
        %938 = vmatpush1.msra.mxu0 0.0
        %939 = vmatprep.subr.mxu0 0.0
        %940 = vmatpush1.msra.mxu0 0.0
        %941 = vmatprep.subr.mxu0 0.0
        %942 = vmatpush1.msra.mxu0 0.0
        %943 = vmatprep.subr.mxu0 0.0
        %944 = vmatpush1.msra.mxu0 0.0
        %945 = vmatprep.subr.mxu0 0.0
        %946 = vmatpush1.msra.mxu0 0.0
        %947 = vmatprep.mubr.f32.mxu0 0.0
        %948 = vmatmul.mubr.f32.gmra.mrb[0].mxu0 %v881
        %v949 = vpop.f32.mrb[0].mxu0
        %v950 = vadd.f32 0.0, %v949
        %v951 = vpop.f32.mrb[0].mxu0
        %v952 = vadd.f32 0.0, %v951
        %953 = vdwg.mxu0
        %954 = vmatprep.subr.mxu0 %v332
        %955 = vmatpush1.msra.mxu0 %v331
        %956 = vmatprep.subr.mxu0 %v336
        %957 = vmatpush1.msra.mxu0 %v335
        %958 = vmatprep.subr.mxu0 %v340
        %959 = vmatpush1.msra.mxu0 %v339
        %960 = vmatprep.subr.mxu0 %v344
        %961 = vmatpush1.msra.mxu0 %v343
        %962 = vmatprep.subr.mxu0 0.0
        %963 = vmatpush1.msra.mxu0 0.0
        %964 = vmatprep.subr.mxu0 0.0
        %965 = vmatpush1.msra.mxu0 0.0
        %966 = vmatprep.subr.mxu0 0.0
        %967 = vmatpush1.msra.mxu0 0.0
        %968 = vmatprep.subr.mxu0 0.0
        %969 = vmatpush1.msra.mxu0 0.0
        %970 = vmatprep.subr.mxu0 0.0
        %971 = vmatpush1.msra.mxu0 0.0
        %972 = vmatprep.subr.mxu0 0.0
        %973 = vmatpush1.msra.mxu0 0.0
        %974 = vmatprep.subr.mxu0 0.0
        %975 = vmatpush1.msra.mxu0 0.0
        %976 = vmatprep.subr.mxu0 0.0
        %977 = vmatpush1.msra.mxu0 0.0
        %978 = vmatprep.subr.mxu0 0.0
        %979 = vmatpush1.msra.mxu0 0.0
        %980 = vmatprep.subr.mxu0 0.0
        %981 = vmatpush1.msra.mxu0 0.0
        %982 = vmatprep.subr.mxu0 0.0
        %983 = vmatpush1.msra.mxu0 0.0
        %984 = vmatprep.subr.mxu0 0.0
        %985 = vmatpush1.msra.mxu0 0.0
        %986 = vmatprep.subr.mxu0 0.0
        %987 = vmatpush1.msra.mxu0 0.0
        %988 = vmatprep.subr.mxu0 0.0
        %989 = vmatpush1.msra.mxu0 0.0
        %990 = vmatprep.subr.mxu0 0.0
        %991 = vmatpush1.msra.mxu0 0.0
        %992 = vmatprep.subr.mxu0 0.0
        %993 = vmatpush1.msra.mxu0 0.0
        %994 = vmatprep.subr.mxu0 0.0
        %995 = vmatpush1.msra.mxu0 0.0
        %996 = vmatprep.subr.mxu0 0.0
        %997 = vmatpush1.msra.mxu0 0.0
        %998 = vmatprep.subr.mxu0 0.0
        %999 = vmatpush1.msra.mxu0 0.0
        %1000 = vmatprep.subr.mxu0 0.0
        %1001 = vmatpush1.msra.mxu0 0.0
        %1002 = vmatprep.subr.mxu0 0.0
        %1003 = vmatpush1.msra.mxu0 0.0
        %1004 = vmatprep.subr.mxu0 0.0
        %1005 = vmatpush1.msra.mxu0 0.0
        %1006 = vmatprep.subr.mxu0 0.0
        %1007 = vmatpush1.msra.mxu0 0.0
        %1008 = vmatprep.subr.mxu0 0.0
        %1009 = vmatpush1.msra.mxu0 0.0
        %1010 = vmatprep.subr.mxu0 0.0
        %1011 = vmatpush1.msra.mxu0 0.0
        %1012 = vmatprep.subr.mxu0 0.0
        %1013 = vmatpush1.msra.mxu0 0.0
        %1014 = vmatprep.subr.mxu0 0.0
        %1015 = vmatpush1.msra.mxu0 0.0
        %1016 = vmatprep.subr.mxu0 0.0
        %1017 = vmatpush1.msra.mxu0 0.0
        %1018 = vmatprep.mubr.f32.mxu0 0.0
        %1019 = vmatmul.mubr.f32.gmra.mrb[0].mxu0 %v881
        %v1020 = vpop.f32.mrb[0].mxu0
        %v1021 = vadd.f32 0.0, %v1020
        %v1022 = vpop.f32.mrb[0].mxu0
        %v1023 = vadd.f32 0.0, %v1022
        %1024 = vdwg.mxu0
        %v1025 = vld [vmem:[%s256] sm:$0xf]
        %v1026 = vld [vmem:[%s261] sm:$0xf]
        %v1031 = vcombine.low %v950, %v952
        %v1032 = vcombine.low %v1021, %v1023
        %v1034 = vunpack.c.l.s4 1966171168
        %v1035 = vunpack.c.0.s8 %v1034
        %v1036 = vlaneseq
        %v1037 = vshrl.u32 %v1036, 7
        %v1038 = vsub.s32 %v1035, %v1037
        %v1039 = vrot.slane %v1031, %v1038
        %v1041 = vunpack.c.l.s4 1966171168
        %v1042 = vunpack.c.0.s8 %v1041
        %v1043 = vlaneseq
        %v1044 = vshrl.u32 %v1043, 7
        %v1045 = vsub.s32 %v1042, %v1044
        %v1046 = vrot.slane %v1032, %v1045
        %v1047 = vcombine.low %v1039, %v1046
        %v1049 = vunpack.c.l.s4 1966171168
        %v1050 = vunpack.c.0.s8 %v1049
        %v1051 = vlaneseq
        %v1052 = vshrl.u32 %v1051, 7
        %v1053 = vsub.s32 %v1050, %v1052
        %v1054 = vrot.slane %v1047, %v1053
        %v1056 = vmul.f32 %v1025, %v1054
        %v1058 = vlaneseq
        %v1059 = vshrl.u32 %v1058, 7
        %v1060 = vsub.s32 0, %v1059
        %v1061 = vrot.slane %v1056, %v1060
        %v1062 = vlaneseq
        %v1063 = vshrl.u32 %v1062, 7
        %v1064 = vsub.s32 1, %v1063
        %v1065 = vrot.slane %v1056, %v1064
        %v1066 = vlaneseq
        %v1067 = vshrl.u32 %v1066, 7
        %v1068 = vsub.s32 2, %v1067
        %v1069 = vrot.slane %v1056, %v1068
        %v1070 = vlaneseq
        %v1071 = vshrl.u32 %v1070, 7
        %v1072 = vsub.s32 3, %v1071
        %v1073 = vrot.slane %v1056, %v1072
        %v1078 = vmul.f32 %v805, %v1061
        %v1079 = vmul.f32 %v807, %v1065
        %v1080 = vmul.f32 %v876, %v1069
        %v1081 = vmul.f32 %v878, %v1073
        %v1086 = vcombine.low %v1078, %v1079
        %v1087 = vcombine.low %v1080, %v1081
        %v1089 = vunpack.c.l.s4 1966171168
        %v1090 = vunpack.c.0.s8 %v1089
        %v1091 = vlaneseq
        %v1092 = vshrl.u32 %v1091, 7
        %v1093 = vsub.s32 %v1090, %v1092
        %v1094 = vrot.slane %v1086, %v1093
        %v1096 = vunpack.c.l.s4 1966171168
        %v1097 = vunpack.c.0.s8 %v1096
        %v1098 = vlaneseq
        %v1099 = vshrl.u32 %v1098, 7
        %v1100 = vsub.s32 %v1097, %v1099
        %v1101 = vrot.slane %v1087, %v1100
        %v1102 = vcombine.low %v1094, %v1101
        %v1104 = vunpack.c.l.s4 1966171168
        %v1105 = vunpack.c.0.s8 %v1104
        %v1106 = vlaneseq
        %v1107 = vshrl.u32 %v1106, 7
        %v1108 = vsub.s32 %v1105, %v1107
        %v1109 = vrot.slane %v1102, %v1108
        %v1111 = vsub.f32 %v1026, %v1109
        %v1112 = vcombine.low %v1061, %v1065
        %v1113 = vcombine.low %v1069, %v1073
        %v1115 = vunpack.c.l.s4 1983009808
        %v1116 = vunpack.c.0.s8 %v1115
        %v1117 = vlaneseq
        %v1118 = vshrl.u32 %v1117, 7
        %v1119 = vsub.s32 %v1116, %v1118
        %v1120 = vrot.slane %v1112, %v1119
        %v1122 = vunpack.c.l.s4 1983009808
        %v1123 = vunpack.c.0.s8 %v1122
        %v1124 = vlaneseq
        %v1125 = vshrl.u32 %v1124, 7
        %v1126 = vsub.s32 %v1123, %v1125
        %v1127 = vrot.slane %v1113, %v1126
        %v1128 = vcombine.low %v1120, %v1127
        %v1130 = vmul.f32 %v264, %v1128
        %v1132 = vlaneseq
        %v1133 = vshrl.u32 %v1132, 7
        %v1134 = vsub.s32 0, %v1133
        %v1135 = vrot.slane %v1111, %v1134
        %v1136 = vlaneseq
        %v1137 = vshrl.u32 %v1136, 7
        %v1138 = vsub.s32 1, %v1137
        %v1139 = vrot.slane %v1111, %v1138
        %v1140 = vlaneseq
        %v1141 = vshrl.u32 %v1140, 7
        %v1142 = vsub.s32 2, %v1141
        %v1143 = vrot.slane %v1111, %v1142
        %v1144 = vlaneseq
        %v1145 = vshrl.u32 %v1144, 7
        %v1146 = vsub.s32 3, %v1145
        %v1147 = vrot.slane %v1111, %v1146
        %v1148 = vcombine.low %v1135, %v1139
        %v1149 = vcombine.low %v1143, %v1147
        %v1151 = vunpack.c.l.s4 1983009808
        %v1152 = vunpack.c.0.s8 %v1151
        %v1153 = vlaneseq
        %v1154 = vshrl.u32 %v1153, 7
        %v1155 = vsub.s32 %v1152, %v1154
        %v1156 = vrot.slane %v1148, %v1155
        %v1158 = vunpack.c.l.s4 1983009808
        %v1159 = vunpack.c.0.s8 %v1158
        %v1160 = vlaneseq
        %v1161 = vshrl.u32 %v1160, 7
        %v1162 = vsub.s32 %v1159, %v1161
        %v1163 = vrot.slane %v1149, %v1162
        %v1164 = vcombine.low %v1156, %v1163
        %v1166 = vadd.f32 %v1130, %v1164
        %1167 = vst [vmem:[%s246] sm:$0xff] %v1166
        %s1168 = sand.u32 %s147, 1
        %s1169 = scalar_lea.sflag [#allocation3], %s1168
        %s1170 = sand.u32 %s147, 1
        %s1171 = smul.addr %s1170, 8
        %s1172 = scalar_lea.vmem [#allocation2], %s1171
        // Predicated region
        $region41: #{tpu_custom_call.1} parent=39 // pred_check
          %p1173 = pneg %p157
        $region42: #{tpu_custom_call.1} parent=39 // pred_check_branch
          %1175 = sbr.rel (%p1173) target = $region44
        $region43: #{tpu_custom_call.1} parent=39 // pred_region
          %s1176 = smul.u32 4, %s19
          %s1178 = ssub.s32 128, 128
          %1179 = vsyncadd %s1169, %s1178
          %s1180 = smul.addr %s1176, 32
          %s1181 = scalar_lea.hbm %s5, %s1180
          %s1183 = sshll.u32 %s1172, 4
          %s1184 = int_to_ptr.vmem [resolvable:$true] %s1183
          %1186 = dma.vmem_to_hbm [thread:$0]  %s1184, 128, %s1181, %s1169
        $region44: #{tpu_custom_call.1} parent=39 // pred_fallthru
          _
      $region40: #{tpu_custom_call.1} parent=5 // pred_fallthru
        _
      %p1187 = scmp.le.s32.totalorder 2, %s14
      // Predicated region
      $region45: #{tpu_custom_call.1} parent=5 // pred_check
        %p1188 = pneg %p1187
      $region46: #{tpu_custom_call.1} parent=5 // pred_check_branch
        %1190 = sbr.rel (%p1188) target = $region48
      $region47: #{tpu_custom_call.1} parent=5 // pred_region
        %s1191 = ssub.s32 %s14, 2
        // Predicated region
        $region49: #{tpu_custom_call.1} parent=47 // pred_check
          %p1192 = pneg %p163
        $region50: #{tpu_custom_call.1} parent=47 // pred_check_branch
          %1194 = sbr.rel (%p1192) target = $region52
        $region51: #{tpu_custom_call.1} parent=47 // pred_region
          %s1195 = sand.u32 %s148, 1
          %s1196 = scalar_lea.sflag [#allocation3], %s1195
          %s1197 = sand.u32 %s148, 1
          %s1198 = smul.addr %s1197, 8
          %s1199 = scalar_lea.vmem [#allocation2], %s1198
          %1200 = dma.done %s1196, 128
        $region52: #{tpu_custom_call.1} parent=47 // pred_fallthru
          _
      $region48: #{tpu_custom_call.1} parent=5 // pred_fallthru
        _
    $region6: #{tpu_custom_call.1} parent=1 // loop_footer
      %s18 = sadd.s32 1, %s14
    $region7: #{tpu_custom_call.1} parent=1 // loop_footer_branch
      %13 = sbr.rel target = $region3
    $region8: #{tpu_custom_call.1} parent=1 // loop_exit
      _
    %1201 = vsyncpa [#allocation3], 1
    %s1202 = scalar_lea.sflag [#allocation3], 1
    %1203 = vsyncpa %s1202, 1

</llo_original>
